<compile_context>
chip_gen: v6e
topology: v6e:2x2x1
jax: 0.10.0
libtpu: 0.0.40
codegen_flags: <defaults>
</compile_context>

<pallas_src>
import jax
import jax.numpy as jnp
from jax.experimental import pallas as pl
from jax.experimental.pallas import tpu as pltpu

# ----- module hyper-parameters (small, consistent with the PyTorch module) ----
PIC_DIM = 1          # global `pic_dim` in the original script (grayscale)
IMG_SIZE = 16
COND_NUM = 10
BATCH = 8

D_IMG = IMG_SIZE * IMG_SIZE * PIC_DIM             # 256  (MXU-aligned K)
D_LAB = COND_NUM                                  # 10   (tiny K, pads to 16)
HIDDEN = 128 * PIC_DIM                            # 128


def _disc_kernel(inp_ref, lab_ref, w1i_ref, w1l_ref, b1_ref, w2_ref, b2_ref,
                 out_ref):
    # inp_ref : (B, D_IMG) f32   lab_ref : (B, D_LAB) f32
    # w1i_ref : (D_IMG, H) bf16  w1l_ref : (D_LAB, H) bf16
    # b1_ref  : (1, H) f32       w2_ref  : (1, H) f32
    # b2_ref  : (1, 1) f32 in SMEM
    # out_ref : (B, 1) f32
    xi = inp_ref[...].astype(jnp.bfloat16)
    xl = lab_ref[...].astype(jnp.bfloat16)

    # fc1: aligned K=256 bf16 matmul + tiny K=10 matmul, f32 accumulation.
    h = jnp.dot(xi, w1i_ref[...], preferred_element_type=jnp.float32)
    h = h + jnp.dot(xl, w1l_ref[...], preferred_element_type=jnp.float32)
    h = h + b1_ref[...]
    h = jnp.maximum(h, 0.0)                                   # ReLU (VPU)

    # fc2 (N=1): VPU multiply + cross-lane reduce instead of an MXU matvec.
    y = jnp.sum(h * w2_ref[...], axis=-1, keepdims=True) + b2_ref[0, 0]

    # sigmoid: exp (EUP) + approximate reciprocal (EUP) — no f32 divide.
    out_ref[...] = pl.reciprocal(1.0 + jnp.exp(-y), approx=True)


def discriminator_forward(inp, label, params):
    """inp: (B, img*img*pic_dim) f32, label: (B, cond_num) f32."""
    w1_img, w1_lab, b1, w2_row, b2 = params
    b = inp.shape[0]

    vmem = pl.BlockSpec(memory_space=pltpu.MemorySpace.VMEM)
    smem = pl.BlockSpec(memory_space=pltpu.MemorySpace.SMEM)
    return pl.pallas_call(
        _disc_kernel,
        out_shape=jax.ShapeDtypeStruct((b, 1), jnp.float32),
        in_specs=[vmem, vmem, vmem, vmem, vmem, vmem, smem],
        out_specs=vmem,
    )(inp, label, w1_img, w1_lab, b1, w2_row, b2)


def init_params(key):
    """Deterministic N(0, 0.02) init, matching nn.init.normal_(std=0.02).

    fc1 weight is stored pre-split ((D_IMG,H) + (D_LAB,H)) and pre-transposed
    vs. PyTorch's (H, D_in); fc2 weight is stored as a (1, H) row. fc1 weights
    are kept in bf16 (halves the dominant operand DMA; accumulation stays f32).
    """
    k1, k2, k3, k4 = jax.random.split(key, 4)
    w1 = 0.02 * jax.random.normal(k1, (D_IMG + D_LAB, HIDDEN), dtype=jnp.float32)
    b1 = 0.02 * jax.random.normal(k2, (1, HIDDEN), dtype=jnp.float32)
    w2_row = 0.02 * jax.random.normal(k3, (1, HIDDEN), dtype=jnp.float32)
    b2 = 0.02 * jax.random.normal(k4, (1, 1), dtype=jnp.float32)
    w1_img = w1[:D_IMG].astype(jnp.bfloat16)
    w1_lab = w1[D_IMG:].astype(jnp.bfloat16)
    return (w1_img, w1_lab, b1, w2_row, b2)


if __name__ == "__main__":
    key = jax.random.PRNGKey(0)
    k_inp, k_lab, k_par = jax.random.split(key, 3)

    inp = jax.random.normal(k_inp, (BATCH, D_IMG), dtype=jnp.float32)
    label = jax.random.normal(k_lab, (BATCH, D_LAB), dtype=jnp.float32)
    params = init_params(k_par)

    out = discriminator_forward(inp, label, params)
    jax.block_until_ready(out)

    # sanity: reference in plain JAX (f32 weights), loose tol for bf16 matmul
    # + approx reciprocal in the kernel.
    w1_img, w1_lab, b1, w2_row, b2 = params
    w1_f32 = jnp.concatenate(
        [w1_img.astype(jnp.float32), w1_lab.astype(jnp.float32)], axis=0)
    x_ref = jnp.concatenate([inp, label], axis=1)
    h_ref = jnp.maximum(x_ref @ w1_f32 + b1, 0.0)
    y_ref = jax.nn.sigmoid(h_ref @ w2_row.T + b2)
    assert out.shape == (BATCH, 1)
    assert jnp.allclose(out, y_ref, atol=1e-2, rtol=1e-2)

    print("KERNEL_OK")
</pallas_src>

<mosaic_0001>
module attributes {stable_mosaic.version = 11 : i64} {
  func.func @_disc_kernel(%arg0: memref<8x256xf32, #tpu.memory_space<vmem>>, %arg1: memref<8x10xf32, #tpu.memory_space<vmem>>, %arg2: memref<256x128xbf16, #tpu.memory_space<vmem>>, %arg3: memref<10x128xbf16, #tpu.memory_space<vmem>>, %arg4: memref<1x128xf32, #tpu.memory_space<vmem>>, %arg5: memref<1x128xf32, #tpu.memory_space<vmem>>, %arg6: memref<1x1xf32, #tpu.memory_space<smem>>, %arg7: memref<8x1xf32, #tpu.memory_space<vmem>>) attributes {dimension_semantics = [], scalar_prefetch = 0 : i64, scratch_operands = 0 : i64, tpu.core_type = #tpu.core_type<tc>} {
    %c0 = arith.constant 0 : index
    %c0_0 = arith.constant 0 : index
    %0 = vector.load %arg0[%c0, %c0_0] : memref<8x256xf32, #tpu.memory_space<vmem>>, vector<8x256xf32>
    %1 = arith.truncf %0 : vector<8x256xf32> to vector<8x256xbf16>
    %c0_1 = arith.constant 0 : index
    %c0_2 = arith.constant 0 : index
    %2 = vector.load %arg1[%c0_1, %c0_2] : memref<8x10xf32, #tpu.memory_space<vmem>>, vector<8x10xf32>
    %3 = arith.truncf %2 : vector<8x10xf32> to vector<8x10xbf16>
    %c0_3 = arith.constant 0 : index
    %c0_4 = arith.constant 0 : index
    %4 = vector.load %arg2[%c0_3, %c0_4] : memref<256x128xbf16, #tpu.memory_space<vmem>>, vector<256x128xbf16>
    %cst = arith.constant dense<0.000000e+00> : vector<8x128xf32>
    %5 = tpu.matmul %1, %4, %cst {dimension_numbers = #tpu.dot_dimension_numbers<[1], [0], [0], [1], [0, 0, 1, 1], [], []>} : vector<8x256xbf16>, vector<256x128xbf16>, vector<8x128xf32> -> vector<8x128xf32>
    %c0_5 = arith.constant 0 : index
    %c0_6 = arith.constant 0 : index
    %6 = vector.load %arg3[%c0_5, %c0_6] : memref<10x128xbf16, #tpu.memory_space<vmem>>, vector<10x128xbf16>
    %cst_7 = arith.constant dense<0.000000e+00> : vector<8x128xf32>
    %7 = tpu.matmul %3, %6, %cst_7 {dimension_numbers = #tpu.dot_dimension_numbers<[1], [0], [0], [1], [0, 0, 1, 1], [], []>} : vector<8x10xbf16>, vector<10x128xbf16>, vector<8x128xf32> -> vector<8x128xf32>
    %8 = arith.addf %5, %7 : vector<8x128xf32>
    %c0_8 = arith.constant 0 : index
    %c0_9 = arith.constant 0 : index
    %9 = vector.load %arg4[%c0_8, %c0_9] : memref<1x128xf32, #tpu.memory_space<vmem>>, vector<1x128xf32>
    %10 = vector.broadcast %9 : vector<1x128xf32> to vector<8x128xf32>
    %11 = arith.addf %8, %10 : vector<8x128xf32>
    %cst_10 = arith.constant 0.000000e+00 : f32
    %12 = vector.broadcast %cst_10 : f32 to vector<8x128xf32>
    %13 = arith.maximumf %11, %12 : vector<8x128xf32>
    %c0_11 = arith.constant 0 : index
    %c0_12 = arith.constant 0 : index
    %14 = vector.load %arg5[%c0_11, %c0_12] : memref<1x128xf32, #tpu.memory_space<vmem>>, vector<1x128xf32>
    %15 = vector.broadcast %14 : vector<1x128xf32> to vector<8x128xf32>
    %16 = arith.mulf %13, %15 : vector<8x128xf32>
    %cst_13 = arith.constant dense<0.000000e+00> : vector<8xf32>
    %17 = vector.multi_reduction <add>, %16, %cst_13 [1] : vector<8x128xf32> to vector<8xf32>
    %18 = vector.shape_cast %17 : vector<8xf32> to vector<8x1xf32>
    %c0_14 = arith.constant 0 : index
    %c0_15 = arith.constant 0 : index
    %19 = memref.load %arg6[%c0_14, %c0_15] : memref<1x1xf32, #tpu.memory_space<smem>>
    %20 = vector.broadcast %19 : f32 to vector<8x1xf32>
    %21 = arith.addf %18, %20 : vector<8x1xf32>
    %cst_16 = arith.constant 0.000000e+00 : f32
    %22 = vector.broadcast %cst_16 : f32 to vector<8x1xf32>
    %23 = arith.subf %22, %21 : vector<8x1xf32>
    %24 = math.exp %23 : vector<8x1xf32>
    %cst_17 = arith.constant 1.000000e+00 : f32
    %25 = vector.broadcast %cst_17 : f32 to vector<8x1xf32>
    %26 = arith.addf %25, %24 : vector<8x1xf32>
    %27 = tpu.reciprocal %26 {approx = true} : vector<8x1xf32> -> vector<8x1xf32>
    %c0_18 = arith.constant 0 : index
    %c0_19 = arith.constant 0 : index
    %28 = vector.load %arg7[%c0_18, %c0_19] : memref<8x1xf32, #tpu.memory_space<vmem>>, vector<8x1xf32>
    tpu.vector_store %arg7[%c0_18, %c0_19], %27 {strides = array<i32>} : memref<8x1xf32, #tpu.memory_space<vmem>>, vector<8x1xf32>,
    return
  }
}

</mosaic_0001>

<llo_original>
// kernel: tpu_custom_call.1
$region0: #{tpu_custom_call.1}
  #allocation0 [shape = 'u32[]', space=smem, size = 0x4, offset = 0x4, fixed_abs, tag = 'smem constant byte address 0x4 - core index']
  #allocation1 [shape = 'u32[144,128]{1,0:T(1,128)}', space=vmem, size = 0x12000, scoped, tag = 'internal scratch']
  #allocation2 [shape = 'f32[1,1]{1,0:T(1,128)S(6)}', space=smem, size = 0x200, scoped, tag = 'scoped memory for tpu_custom_call.1']
  %s0 = inlined_call_operand.hbm [shape: f32[8,256], index: 0, kind: input, shape index: {}]
  %s1 = inlined_call_operand.hbm [shape: f32[8,10], index: 1, kind: input, shape index: {}]
  %s2 = inlined_call_operand.hbm [shape: bf16[256,128], index: 2, kind: input, shape index: {}]
  %s3 = inlined_call_operand.hbm [shape: bf16[10,128], index: 3, kind: input, shape index: {}]
  %s4 = inlined_call_operand.vmem [shape: f32[1,128], index: 4, kind: input, shape index: {}]
  %s5 = inlined_call_operand.vmem [shape: f32[1,128], index: 5, kind: input, shape index: {}]
  %s6 = inlined_call_operand.<no memory space> [shape: f32[1,1], index: 6, kind: input, shape index: {}]
  %s7 = inlined_call_operand.vmem [shape: f32[8,1], index: 7, kind: output, shape index: {}]
  %s8 = sld [smem:[#allocation0]]
  $region54: #{tpu_custom_call.1} parent=0
    _
  %s10 = ssub.s32 1, %s8
  %s11 = scalar_select 0, %s10, %s8
  %12 = sst [smem:[#allocation2]] %s6
  $region1: #{tpu_custom_call.1} parent=0
    #allocation3 [shape = 'u8[8192]{0}', space=vmem, size = 0x2000, scoped, tag = 'input window, operand 0, single buffered']
    #allocation4 [shape = 's32[1]{0}', space=sflag, size = 0x4, scoped, tag = 'scoped memory for tpu_custom_call.1']
    #allocation5 [shape = 'u8[4096]{0}', space=vmem, size = 0x1000, scoped, tag = 'input window, operand 1, single buffered']
    #allocation6 [shape = 's32[1]{0}', space=sflag, size = 0x4, scoped, tag = 'scoped memory for tpu_custom_call.1']
    #allocation7 [shape = 'u8[65536]{0}', space=vmem, size = 0x10000, scoped, tag = 'input window, operand 2, single buffered']
    #allocation8 [shape = 'u8[4096]{0}', space=vmem, size = 0x1000, scoped, tag = 'input window, operand 3, single buffered']
    #allocation9 [shape = 's32[1]{0}', space=sflag, size = 0x4, scoped, tag = 'scoped memory for tpu_custom_call.1']
    %13 = vsyncpa [#allocation4], 0
    %14 = vsyncpa [#allocation6], 0
    %15 = vsyncpa [#allocation9], 0
    // Predicated region
    $region2: #{tpu_custom_call.1} parent=1 // pred_check
      _
    $region3: #{tpu_custom_call.1} parent=1 // pred_check_branch
      %17 = sbr.rel (0) target = $region5
    $region4: #{tpu_custom_call.1} parent=1 // pred_region
      %s19 = ssub.s32 256, 256
      %20 = vsyncadd [#allocation4], %s19
      %s22 = sshll.u32 [#allocation3], 4
      %s23 = int_to_ptr.vmem [resolvable:$true] %s22
      %25 = dma.hbm_to_vmem [thread:$0]  %s0, 256, %s23, [#allocation4]
    $region5: #{tpu_custom_call.1} parent=1 // pred_fallthru
      _
    // Predicated region
    $region6: #{tpu_custom_call.1} parent=1 // pred_check
      _
    $region7: #{tpu_custom_call.1} parent=1 // pred_check_branch
      %27 = sbr.rel (0) target = $region9
    $region8: #{tpu_custom_call.1} parent=1 // pred_region
      %s29 = ssub.s32 128, 128
      %30 = vsyncadd [#allocation6], %s29
      %s32 = sshll.u32 [#allocation5], 4
      %s33 = int_to_ptr.vmem [resolvable:$true] %s32
      %35 = dma.hbm_to_vmem [thread:$0]  %s1, 128, %s33, [#allocation6]
    $region9: #{tpu_custom_call.1} parent=1 // pred_fallthru
      _
    // Predicated region
    $region10: #{tpu_custom_call.1} parent=1 // pred_check
      _
    $region11: #{tpu_custom_call.1} parent=1 // pred_check_branch
      %37 = sbr.rel (0) target = $region13
    $region12: #{tpu_custom_call.1} parent=1 // pred_region
      %s39 = ssub.s32 2048, 2048
      %40 = vsyncadd [#allocation6], %s39
      %s41 = sshll.u32 [#allocation7], 4
      %s42 = int_to_ptr.vmem [resolvable:$true] %s41
      %47 = dma.hbm_to_vmem [thread:$0]  %s2, 2048, %s42, [#allocation6], 64, 64, 4
    $region13: #{tpu_custom_call.1} parent=1 // pred_fallthru
      _
    // Predicated region
    $region14: #{tpu_custom_call.1} parent=1 // pred_check
      _
    $region15: #{tpu_custom_call.1} parent=1 // pred_check_branch
      %49 = sbr.rel (0) target = $region17
    $region16: #{tpu_custom_call.1} parent=1 // pred_region
      %s51 = ssub.s32 128, 128
      %52 = vsyncadd [#allocation9], %s51
      %s53 = sshll.u32 [#allocation8], 4
      %s54 = int_to_ptr.vmem [resolvable:$true] %s53
      %59 = dma.hbm_to_vmem [thread:$0]  %s3, 128, %s54, [#allocation9], 64, 64, 4
    $region17: #{tpu_custom_call.1} parent=1 // pred_fallthru
      _
    // Predicated region
    $region18: #{tpu_custom_call.1} parent=1 // pred_check
      _
    $region19: #{tpu_custom_call.1} parent=1 // pred_check_branch
      %61 = sbr.rel (0) target = $region21
    $region20: #{tpu_custom_call.1} parent=1 // pred_region
      _
    $region21: #{tpu_custom_call.1} parent=1 // pred_fallthru
      _
    // Predicated region
    $region22: #{tpu_custom_call.1} parent=1 // pred_check
      _
    $region23: #{tpu_custom_call.1} parent=1 // pred_check_branch
      %63 = sbr.rel (0) target = $region25
    $region24: #{tpu_custom_call.1} parent=1 // pred_region
      _
    $region25: #{tpu_custom_call.1} parent=1 // pred_fallthru
      _
    // Predicated region
    $region26: #{tpu_custom_call.1} parent=1 // pred_check
      _
    $region27: #{tpu_custom_call.1} parent=1 // pred_check_branch
      %65 = sbr.rel (0) target = $region29
    $region28: #{tpu_custom_call.1} parent=1 // pred_region
      _
    $region29: #{tpu_custom_call.1} parent=1 // pred_fallthru
      _
    // Predicated region
    $region30: #{tpu_custom_call.1} parent=1 // pred_check
      _
    $region31: #{tpu_custom_call.1} parent=1 // pred_check_branch
      %67 = sbr.rel (0) target = $region33
    $region32: #{tpu_custom_call.1} parent=1 // pred_region
      %68 = dma.done [#allocation4], 256
    $region33: #{tpu_custom_call.1} parent=1 // pred_fallthru
      _
    // Predicated region
    $region34: #{tpu_custom_call.1} parent=1 // pred_check
      _
    $region35: #{tpu_custom_call.1} parent=1 // pred_check_branch
      %70 = sbr.rel (0) target = $region37
    $region36: #{tpu_custom_call.1} parent=1 // pred_region
      %71 = dma.done [#allocation6], 128
    $region37: #{tpu_custom_call.1} parent=1 // pred_fallthru
      _
    // Predicated region
    $region38: #{tpu_custom_call.1} parent=1 // pred_check
      _
    $region39: #{tpu_custom_call.1} parent=1 // pred_check_branch
      %73 = sbr.rel (0) target = $region41
    $region40: #{tpu_custom_call.1} parent=1 // pred_region
      %74 = dma.done [#allocation6], 2048
    $region41: #{tpu_custom_call.1} parent=1 // pred_fallthru
      _
    // Predicated region
    $region42: #{tpu_custom_call.1} parent=1 // pred_check
      _
    $region43: #{tpu_custom_call.1} parent=1 // pred_check_branch
      %76 = sbr.rel (0) target = $region45
    $region44: #{tpu_custom_call.1} parent=1 // pred_region
      %77 = dma.done [#allocation9], 128
    $region45: #{tpu_custom_call.1} parent=1 // pred_fallthru
      _
    %v79 = vld [vmem:[#allocation3] sm:$0xff]
    %v80 = vld [vmem:[#allocation3 + $0x8] sm:$0xff]
    %v81 = vpack.c.bf16 %v79, %v79
    %v82 = vpack.c.bf16 %v80, %v80
    %v83 = vld [vmem:[#allocation5] sm:$0xff]
    %v84 = vpack.c.bf16 %v83, %v83
    %v85 = vld [vmem:[#allocation7] sm:$0xf]
    %v86 = vld [vmem:[#allocation7 + $0x4] sm:$0xf]
    %v87 = vld [vmem:[#allocation7 + $0x8] sm:$0xf]
    %v88 = vld [vmem:[#allocation7 + $0xc] sm:$0xf]
    %v89 = vld [vmem:[#allocation7 + $0x10] sm:$0xf]
    %v90 = vld [vmem:[#allocation7 + $0x14] sm:$0xf]
    %v91 = vld [vmem:[#allocation7 + $0x18] sm:$0xf]
    %v92 = vld [vmem:[#allocation7 + $0x1c] sm:$0xf]
    %v93 = vld [vmem:[#allocation7 + $0x20] sm:$0xf]
    %v94 = vld [vmem:[#allocation7 + $0x24] sm:$0xf]
    %v95 = vld [vmem:[#allocation7 + $0x28] sm:$0xf]
    %v96 = vld [vmem:[#allocation7 + $0x2c] sm:$0xf]
    %v97 = vld [vmem:[#allocation7 + $0x30] sm:$0xf]
    %v98 = vld [vmem:[#allocation7 + $0x34] sm:$0xf]
    %v99 = vld [vmem:[#allocation7 + $0x38] sm:$0xf]
    %v100 = vld [vmem:[#allocation7 + $0x3c] sm:$0xf]
    %v101 = vld [vmem:[#allocation7 + $0x40] sm:$0xf]
    %v102 = vld [vmem:[#allocation7 + $0x44] sm:$0xf]
    %v103 = vld [vmem:[#allocation7 + $0x48] sm:$0xf]
    %v104 = vld [vmem:[#allocation7 + $0x4c] sm:$0xf]
    %v105 = vld [vmem:[#allocation7 + $0x50] sm:$0xf]
    %v106 = vld [vmem:[#allocation7 + $0x54] sm:$0xf]
    %v107 = vld [vmem:[#allocation7 + $0x58] sm:$0xf]
    %v108 = vld [vmem:[#allocation7 + $0x5c] sm:$0xf]
    %v109 = vld [vmem:[#allocation7 + $0x60] sm:$0xf]
    %v110 = vld [vmem:[#allocation7 + $0x64] sm:$0xf]
    %v111 = vld [vmem:[#allocation7 + $0x68] sm:$0xf]
    %v112 = vld [vmem:[#allocation7 + $0x6c] sm:$0xf]
    %v113 = vld [vmem:[#allocation7 + $0x70] sm:$0xf]
    %v114 = vld [vmem:[#allocation7 + $0x74] sm:$0xf]
    %v115 = vld [vmem:[#allocation7 + $0x78] sm:$0xf]
    %v116 = vld [vmem:[#allocation7 + $0x7c] sm:$0xf]
    %v117 = vld [vmem:[#allocation8] sm:$0xf]
    %v118 = vld [vmem:[#allocation8 + $0x4] sm:$0x1]
    %v121 = vunpack.c.l.b16 %v117
    %v122 = vunpack.c.l.b16 %v118
    %v123 = vpack.c.b16 %v122, %v121
    %vm124 = vcmask 80896
    %v126 = vsel %vm124, %v84, 0
    %vm128 = vcmask 1044480
    %v130 = vsel %vm128, %v123, 0
    %132 = vmatprep.subr.bf16.mxu0 0
    %133 = vmatpush1.bf16.msra.mxu0 0
    %134 = vmatprep.subr.bf16.mxu0 0
    %135 = vmatpush1.bf16.msra.mxu0 0
    %136 = vmatprep.subr.bf16.mxu0 0
    %137 = vmatpush1.bf16.msra.mxu0 0
    %138 = vmatprep.subr.bf16.mxu0 0
    %139 = vmatpush1.bf16.msra.mxu0 0
    %140 = vmatprep.subr.bf16.mxu0 0
    %141 = vmatpush1.bf16.msra.mxu0 0
    %142 = vmatprep.subr.bf16.mxu0 0
    %143 = vmatpush1.bf16.msra.mxu0 0
    %144 = vmatprep.subr.bf16.mxu0 0
    %145 = vmatpush1.bf16.msra.mxu0 0
    %146 = vmatprep.subr.bf16.mxu0 0
    %147 = vmatpush1.bf16.msra.mxu0 %v130
    %148 = vmatprep.subr.bf16.mxu0 0
    %149 = vmatpush2.bf16.msra.mxu0 0
    %150 = vmatprep.subr.bf16.mxu0 0
    %151 = vmatpush2.bf16.msra.mxu0 0
    %152 = vmatprep.subr.bf16.mxu0 0
    %153 = vmatpush2.bf16.msra.mxu0 0
    %154 = vmatprep.subr.bf16.mxu0 0
    %155 = vmatpush2.bf16.msra.mxu0 0
    %156 = vmatprep.subr.bf16.mxu0 0
    %157 = vmatpush2.bf16.msra.mxu0 0
    %158 = vmatprep.subr.bf16.mxu0 0
    %159 = vmatpush2.bf16.msra.mxu0 0
    %160 = vmatprep.subr.bf16.mxu0 0
    %161 = vmatpush2.bf16.msra.mxu0 0
    %162 = vmatprep.subr.bf16.mxu0 0
    %163 = vmatpush2.bf16.msra.mxu0 0
    %164 = vmatprep.mubr.bf16.mxu0 0
    %165 = vmatmul.mubr.bf16.gmra.mxu0 %v126
    %v166 = vpop.f32.mrf.mxu0
    %v167 = vadd.f32 0.0, %v166
    %v168 = vpop.f32.mrf.mxu0
    %v169 = vpop.f32.mrf.mxu0
    %v170 = vpop.f32.mrf.mxu0
    %171 = vdwg.mxu0
    %v204 = vunpack.c.l.b16 %v85
    %v205 = vunpack.c.l.b16 %v86
    %v206 = vunpack.c.l.b16 %v87
    %v207 = vunpack.c.l.b16 %v88
    %v208 = vunpack.c.l.b16 %v89
    %v209 = vunpack.c.l.b16 %v90
    %v210 = vunpack.c.l.b16 %v91
    %v211 = vunpack.c.l.b16 %v92
    %v212 = vunpack.c.l.b16 %v93
    %v213 = vunpack.c.l.b16 %v94
    %v214 = vunpack.c.l.b16 %v95
    %v215 = vunpack.c.l.b16 %v96
    %v216 = vunpack.c.l.b16 %v97
    %v217 = vunpack.c.l.b16 %v98
    %v218 = vunpack.c.l.b16 %v99
    %v219 = vunpack.c.l.b16 %v100
    %v220 = vunpack.c.l.b16 %v101
    %v221 = vunpack.c.l.b16 %v102
    %v222 = vunpack.c.l.b16 %v103
    %v223 = vunpack.c.l.b16 %v104
    %v224 = vunpack.c.l.b16 %v105
    %v225 = vunpack.c.l.b16 %v106
    %v226 = vunpack.c.l.b16 %v107
    %v227 = vunpack.c.l.b16 %v108
    %v228 = vunpack.c.l.b16 %v109
    %v229 = vunpack.c.l.b16 %v110
    %v230 = vunpack.c.l.b16 %v111
    %v231 = vunpack.c.l.b16 %v112
    %v232 = vunpack.c.l.b16 %v113
    %v233 = vunpack.c.l.b16 %v114
    %v234 = vunpack.c.l.b16 %v115
    %v235 = vunpack.c.l.b16 %v116
    %v236 = vpack.c.b16 %v205, %v204
    %v237 = vpack.c.b16 %v207, %v206
    %v238 = vpack.c.b16 %v209, %v208
    %v239 = vpack.c.b16 %v211, %v210
    %v240 = vpack.c.b16 %v213, %v212
    %v241 = vpack.c.b16 %v215, %v214
    %v242 = vpack.c.b16 %v217, %v216
    %v243 = vpack.c.b16 %v219, %v218
    %v244 = vpack.c.b16 %v221, %v220
    %v245 = vpack.c.b16 %v223, %v222
    %v246 = vpack.c.b16 %v225, %v224
    %v247 = vpack.c.b16 %v227, %v226
    %v248 = vpack.c.b16 %v229, %v228
    %v249 = vpack.c.b16 %v231, %v230
    %v250 = vpack.c.b16 %v233, %v232
    %v251 = vpack.c.b16 %v235, %v234
    %268 = vmatprep.subr.bf16.mxu0 0
    %269 = vmatpush1.bf16.msra.mxu0 %v243
    %270 = vmatprep.subr.bf16.mxu0 0
    %271 = vmatpush1.bf16.msra.mxu0 %v242
    %272 = vmatprep.subr.bf16.mxu0 0
    %273 = vmatpush1.bf16.msra.mxu0 %v241
    %274 = vmatprep.subr.bf16.mxu0 0
    %275 = vmatpush1.bf16.msra.mxu0 %v240
    %276 = vmatprep.subr.bf16.mxu0 0
    %277 = vmatpush1.bf16.msra.mxu0 %v239
    %278 = vmatprep.subr.bf16.mxu0 0
    %279 = vmatpush1.bf16.msra.mxu0 %v238
    %280 = vmatprep.subr.bf16.mxu0 0
    %281 = vmatpush1.bf16.msra.mxu0 %v237
    %282 = vmatprep.subr.bf16.mxu0 0
    %283 = vmatpush1.bf16.msra.mxu0 %v236
    %284 = vmatprep.subr.bf16.mxu0 0
    %285 = vmatpush2.bf16.msra.mxu0 %v251
    %286 = vmatprep.subr.bf16.mxu0 0
    %287 = vmatpush2.bf16.msra.mxu0 %v250
    %288 = vmatprep.subr.bf16.mxu0 0
    %289 = vmatpush2.bf16.msra.mxu0 %v249
    %290 = vmatprep.subr.bf16.mxu0 0
    %291 = vmatpush2.bf16.msra.mxu0 %v248
    %292 = vmatprep.subr.bf16.mxu0 0
    %293 = vmatpush2.bf16.msra.mxu0 %v247
    %294 = vmatprep.subr.bf16.mxu0 0
    %295 = vmatpush2.bf16.msra.mxu0 %v246
    %296 = vmatprep.subr.bf16.mxu0 0
    %297 = vmatpush2.bf16.msra.mxu0 %v245
    %298 = vmatprep.subr.bf16.mxu0 0
    %299 = vmatpush2.bf16.msra.mxu0 %v244
    %300 = vmatprep.mubr.bf16.mxu0 %v82
    %301 = vmatmul.mubr.bf16.gmra.mxu0 %v81
    %v302 = vpop.f32.mrf.mxu0
    %v303 = vadd.f32 %v167, %v302
    %v304 = vpop.f32.mrf.mxu0
    %v305 = vpop.f32.mrf.mxu0
    %v306 = vpop.f32.mrf.mxu0
    %307 = vdwg.mxu0
    %v308 = vld [vmem:[%s4] sm:$0x1]
    %v310 = vlaneseq
    %v311 = vshrl.u32 %v310, 7
    %v312 = vsub.s32 0, %v311
    %v313 = vrot.slane %v308, %v312
    %v315 = vadd.f32 %v303, %v313
    %v316 = vmax.f32 %v315, 0.0
    %v317 = vld [vmem:[%s5] sm:$0x1]
    %v319 = vlaneseq
    %v320 = vshrl.u32 %v319, 7
    %v321 = vsub.s32 0, %v320
    %v322 = vrot.slane %v317, %v321
    %v324 = vmul.f32 %v316, %v322
    %325 = vadd.xlane.f32.xlu0 %v324
    %v326 = vpop.xlane.xlu0 %325
    %s327 = sld [smem:[#allocation2]]
    %v328 = vstv %s327
    %v329 = vadd.f32 %v326, %v328
    %v330 = vsub.f32 0.0, %v329
    %v331 = vmul.f32 %v330, 1.442695
    %v332 = vpow.pop %v331
    %v333 = vadd.f32 %v332, 1.0
    %v334 = vrcp.pop %v333
    %vm335 = vcmask 7168
    %336 = vst.msk [vmem:[%s7] sm:$0xff] %vm335, %v334
    // Predicated region
    $region46: #{tpu_custom_call.1} parent=1 // pred_check
      _
    $region47: #{tpu_custom_call.1} parent=1 // pred_check_branch
      %338 = sbr.rel (0) target = $region49
    $region48: #{tpu_custom_call.1} parent=1 // pred_region
      _
    $region49: #{tpu_custom_call.1} parent=1 // pred_fallthru
      _
    // Predicated region
    $region50: #{tpu_custom_call.1} parent=1 // pred_check
      _
    $region51: #{tpu_custom_call.1} parent=1 // pred_check_branch
      %340 = sbr.rel (0) target = $region53
    $region52: #{tpu_custom_call.1} parent=1 // pred_region
      _
    $region53: #{tpu_custom_call.1} parent=1 // pred_fallthru
      _
    %341 = vsyncpa [#allocation4], 1
    %342 = vsyncpa [#allocation6], 1
    %343 = vsyncpa [#allocation9], 1

</llo_original>
